<compile_context>
chip_gen: v5e
topology: v5e:2x2
jax: 0.10.0
libtpu: 0.0.40
codegen_flags: <defaults>
</compile_context>

<pallas_src>
import functools
import math

import jax
import jax.numpy as jnp
from jax import lax
from jax.experimental import pallas as pl
from jax.experimental.pallas import tpu as pltpu

_INV_SQRT2 = 1.0 / math.sqrt(2.0)
_TANH_C = math.sqrt(2.0 / math.pi)


def _round_up(a, b):
    return (a + b - 1) // b * b


def _gelu_f32(g32, approximate):
    if approximate:
        # tanh approximation -> EUP (separate VLIW issue slot).  Opt-in only: it does
        # not bit-match F.gelu(approximate='none').
        return 0.5 * g32 * (1.0 + jnp.tanh(_TANH_C * (g32 + 0.044715 * g32 * g32 * g32)))
    # exact erf-based GELU (F.gelu default)
    return 0.5 * g32 * (1.0 + lax.erf(g32 * _INV_SQRT2))


def _geglu_split_kernel(x_ref, gate_ref, o_ref, *, approximate):
    # x_ref / gate_ref / o_ref: (tm, tn) lane-dense tiles (left half, right half, out).
    # Compute in f32, cast once at the store (single rounding for bf16 inputs).
    x32 = x_ref[...].astype(jnp.float32)
    g32 = gate_ref[...].astype(jnp.float32)
    o_ref[...] = (_gelu_f32(g32, approximate) * x32).astype(o_ref.dtype)


def _geglu_fused_kernel(x_ref, o_ref, *, approximate):
    # Fallback for d % 128 != 0: x_ref is (tm, 2*d); slice the halves in-kernel.
    # TODO(synk): for large non-128-multiple d the gate slice starts mid-lane-tile and
    # costs a per-block lane relayout; a (M, 2, D) two-ref layout would avoid it but
    # needs a 1-wide second-to-last block dim, which the (8,128) block rule disallows.
    d = o_ref.shape[-1]
    x32 = x_ref[:, :d].astype(jnp.float32)
    g32 = x_ref[:, d:].astype(jnp.float32)
    o_ref[...] = (_gelu_f32(g32, approximate) * x32).astype(o_ref.dtype)


def geglu(x, *, dim=-1, approximate=False, target_block_bytes=2 << 20):
    """GEGLU: x1, gate = split(x, 2, axis=dim); return gelu(gate) * x1."""
    ndim = x.ndim
    axis = dim % ndim
    if axis != ndim - 1:
        # TODO(synk): non-last-dim split pays two wrapper transposes; fuse if it matters.
        x = jnp.moveaxis(x, axis, -1)

    orig_shape = x.shape
    two_d = orig_shape[-1]
    assert two_d % 2 == 0, "split dim must be even (2*D)"
    d = two_d // 2
    lead = orig_shape[:-1]

    out_dtype = x.dtype
    dtype_bytes = jnp.dtype(x.dtype).itemsize
    sub = 8 * max(1, 4 // dtype_bytes)  # sublane multiple: f32->8, bf16->16, int8->32

    x2 = x.reshape(-1, two_d)
    m = x2.shape[0]

    if m == 0 or d == 0:
        out = jnp.zeros((*lead, d), dtype=out_dtype)
        return jnp.moveaxis(out, -1, axis) if axis != ndim - 1 else out

    # ---- VMEM budget / limit (generation-aware: v7x 64 MiB/TC, v5e/v6e 128 MiB) ----
    try:
        vmem_cap = int(getattr(pltpu.get_tpu_info(), "vmem_capacity_bytes", 64 << 20))
    except Exception:
        vmem_cap = 64 << 20
    vmem_budget = min(32 << 20, (vmem_cap * 3) // 8)  # what we size blocks against

    fast = (d % 128 == 0)

    # ---- lane (D) tile ----
    if fast:
        # largest multiple-of-128 divisor of d whose footprint fits even at minimal tm
        cap = max(128, min(d, (vmem_budget // (6 * sub * dtype_bytes)) // 128 * 128))
        tn = 128
        for cand in range(cap, 127, -128):
            if d % cand == 0:
                tn = cand
                break
        nd = d // tn
    else:
        tn = d  # full-width blocks (block dim == full array dim is always legal)
        nd = 1

    # ---- row (M) tile: target ~target_block_bytes per array block, auto-shrink ----
    tm = _round_up(max(1, target_block_bytes // (tn * dtype_bytes)), sub)
    tm = min(tm, _round_up(m, sub))
    while tm > sub and 6 * tm * tn * dtype_bytes > vmem_budget:
        tm = max(sub, _round_up(tm // 2, sub))

    # v7x megacore: ensure >= 2 grid steps (when possible) so both TCs get work.
    while pl.cdiv(m, tm) * nd < 2 and tm > sub:
        new_tm = max(sub, _round_up(tm // 2, sub))
        if new_tm == tm:
            break
        tm = new_tm

    nm = pl.cdiv(m, tm)  # ragged tail block: OOB reads padded, OOB writes dropped

    needed = 6 * tm * tn * dtype_bytes  # 2 inputs + 1 output, double-buffered
    vmem_limit = max(32 << 20, int(needed * 1.5) + (2 << 20))
    vmem_limit = min(vmem_limit, (vmem_cap * 3) // 4)
    vmem_limit = max(vmem_limit, needed + (1 << 20))

    if fast:
        grid = (nm, nd)
        in_specs = [
            pl.BlockSpec((tm, tn), lambda i, j: (i, j)),              # left half (x)
            pl.BlockSpec((tm, tn), lambda i, j, _o=nd: (i, j + _o)),  # right half (gate)
        ]
        out_specs = pl.BlockSpec((tm, tn), lambda i, j: (i, j))
        kernel = functools.partial(_geglu_split_kernel, approximate=approximate)
        operands = (x2, x2)  # same HBM buffer, two lane-dense windows -- no extra copy
        dims = ("parallel", "parallel")
    else:
        grid = (nm,)
        in_specs = [pl.BlockSpec((tm, two_d), lambda i: (i, 0))]
        out_specs = pl.BlockSpec((tm, d), lambda i: (i, 0))
        kernel = functools.partial(_geglu_fused_kernel, approximate=approximate)
        operands = (x2,)
        dims = ("parallel",)

    out = pl.pallas_call(
        kernel,
        out_shape=jax.ShapeDtypeStruct((m, d), out_dtype),
        grid_spec=pltpu.PrefetchScalarGridSpec(
            num_scalar_prefetch=0,
            grid=grid,
            in_specs=in_specs,
            out_specs=out_specs,
        ),
        compiler_params=pltpu.CompilerParams(
            dimension_semantics=dims,
            vmem_limit_bytes=int(vmem_limit),
        ),
    )(*operands)

    out = out.reshape(*lead, d)
    if axis != ndim - 1:
        out = jnp.moveaxis(out, -1, axis)
    return out


def _geglu_ref(x, approximate=False):
    x1, gate = jnp.split(x, 2, axis=-1)
    return jax.nn.gelu(gate, approximate=approximate) * x1


if __name__ == "__main__":
    key = jax.random.PRNGKey(0)
    k1, k2, k3 = jax.random.split(key, 3)

    # 1) small-D fallback path (module's toy shape): B=2, S=8, D=32  (2*D = 64)
    x = jax.random.normal(k1, (2, 8, 64), dtype=jnp.float32)
    out = jax.block_until_ready(geglu(x))
    ref = _geglu_ref(x)
    assert out.shape == (2, 8, 32), out.shape
    assert jnp.allclose(out, ref, atol=1e-5, rtol=1e-5), float(jnp.max(jnp.abs(out - ref)))

    # 2) lane-dense fast path with ragged M (m = 3*7 = 21, not a row-tile multiple)
    x2 = jax.random.normal(k2, (3, 7, 256), dtype=jnp.float32)
    out2 = jax.block_until_ready(geglu(x2))
    ref2 = _geglu_ref(x2)
    assert out2.shape == (3, 7, 128), out2.shape
    assert jnp.allclose(out2, ref2, atol=1e-5, rtol=1e-5), float(jnp.max(jnp.abs(out2 - ref2)))

    # 3) bf16 fast path (f32 compute, single rounding at the store)
    x3 = jax.random.normal(k3, (1, 16, 512), dtype=jnp.float32).astype(jnp.bfloat16)
    out3 = jax.block_until_ready(geglu(x3))
    ref3 = _geglu_ref(x3.astype(jnp.float32))
    assert out3.shape == (1, 16, 256), out3.shape
    assert float(jnp.max(jnp.abs(out3.astype(jnp.float32) - ref3))) < 0.05

    # 4) opt-in tanh-approximate GELU (EUP path for v7x/v6e) vs the matching JAX ref
    out4 = jax.block_until_ready(geglu(x2, approximate=True))
    ref4 = _geglu_ref(x2, approximate=True)
    assert jnp.allclose(out4, ref4, atol=1e-4, rtol=1e-4), float(jnp.max(jnp.abs(out4 - ref4)))

    print("KERNEL_OK")
</pallas_src>

<mosaic_0001>
module attributes {stable_mosaic.version = 11 : i64} {
  func.func @_geglu_fused_kernel(%arg0: i32, %arg1: memref<8x64xf32, #tpu.memory_space<vmem>>, %arg2: memref<8x32xf32, #tpu.memory_space<vmem>>) attributes {dimension_semantics = [#tpu.dimension_semantics<parallel>], iteration_bounds = array<i64: 2>, scalar_prefetch = 0 : i64, scratch_operands = 0 : i64, tpu.core_type = #tpu.core_type<tc>, window_params = [{transform_indices = @transform_0, window_bounds = array<i64: 8, 64>}, {transform_indices = @transform_1, window_bounds = array<i64: 8, 32>}]} {
    %c0 = arith.constant 0 : index
    %c0_0 = arith.constant 0 : index
    %0 = vector.load %arg1[%c0, %c0_0] : memref<8x64xf32, #tpu.memory_space<vmem>>, vector<8x32xf32>
    %c0_1 = arith.constant 0 : index
    %c32 = arith.constant 32 : index
    %1 = vector.load %arg1[%c0_1, %c32] : memref<8x64xf32, #tpu.memory_space<vmem>>, vector<8x32xf32>
    %cst = arith.constant 5.000000e-01 : f32
    %2 = vector.broadcast %cst : f32 to vector<8x32xf32>
    %3 = arith.mulf %2, %1 : vector<8x32xf32>
    %cst_2 = arith.constant 0.707106769 : f32
    %4 = vector.broadcast %cst_2 : f32 to vector<8x32xf32>
    %5 = arith.mulf %1, %4 : vector<8x32xf32>
    %6 = math.erf %5 : vector<8x32xf32>
    %cst_3 = arith.constant 1.000000e+00 : f32
    %7 = vector.broadcast %cst_3 : f32 to vector<8x32xf32>
    %8 = arith.addf %7, %6 : vector<8x32xf32>
    %9 = arith.mulf %3, %8 : vector<8x32xf32>
    %10 = arith.mulf %9, %0 : vector<8x32xf32>
    %c0_4 = arith.constant 0 : index
    %c0_5 = arith.constant 0 : index
    %11 = vector.load %arg2[%c0_4, %c0_5] : memref<8x32xf32, #tpu.memory_space<vmem>>, vector<8x32xf32>
    tpu.vector_store %arg2[%c0_4, %c0_5], %10 {strides = array<i32>} : memref<8x32xf32, #tpu.memory_space<vmem>>, vector<8x32xf32>,
    return
  }
  func.func @transform_0(%arg0: i32) -> (i32, i32) {
    %c0_i32 = arith.constant 0 : i32
    %c0_i32_0 = arith.constant 0 : i32
    return %arg0, %c0_i32 : i32, i32
  }
  func.func @transform_1(%arg0: i32) -> (i32, i32) {
    %c0_i32 = arith.constant 0 : i32
    %c0_i32_0 = arith.constant 0 : i32
    return %arg0, %c0_i32 : i32, i32
  }
}

</mosaic_0001>

<llo_original>
// kernel: tpu_custom_call.1
$region0: #{tpu_custom_call.1}
  #allocation0 [shape = 'u32[]', space=smem, size = 0x4, offset = 0x4, fixed_abs, tag = 'smem constant byte address 0x4 - core index']
  #allocation1 [shape = 'u32[72,128]{1,0:T(1,128)}', space=vmem, size = 0x9000, scoped, tag = 'internal scratch']
  %s0 = inlined_call_operand.hbm [shape: f32[16,64], index: 0, kind: input, shape index: {}]
  %s1 = inlined_call_operand.hbm [shape: f32[16,32], index: 1, kind: output, shape index: {}]
  %s2 = sld [smem:[#allocation0]]
  $region41: #{tpu_custom_call.1} parent=0
    _
  %s4 = ssub.s32 1, %s2
  %s5 = scalar_select 0, %s4, %s2
  $region1: #{tpu_custom_call.1} parent=0
    #allocation2 [shape = 'u8[8192]{0}', space=vmem, size = 0x2000, scoped, tag = 'input window, operand 0']
    #allocation3 [shape = 's32[2]{0}', space=sflag, size = 0x8, scoped, tag = 'scoped memory for tpu_custom_call.1']
    #allocation4 [shape = 's32[2]{0}', space=sflag, size = 0x8, scoped, tag = 'scoped memory for tpu_custom_call.1']
    #allocation5 [shape = 'u8[8192]{0}', space=vmem, size = 0x2000, scoped, tag = 'output window, operand 0']
    %6 = vsyncpa [#allocation3], 0
    %s7 = scalar_lea.sflag [#allocation3], 1
    %8 = vsyncpa %s7, 0
    %9 = vsyncpa [#allocation4], 0
    %s10 = scalar_lea.sflag [#allocation4], 1
    %11 = vsyncpa %s10, 0
    loop: start=0, step=1, limit=4
    $region2: #{tpu_custom_call.1} parent=1 // loop_pre_header
      _
    $region3: #{tpu_custom_call.1} parent=1 // loop_header
      %s13 = sphi 0, %s17
      %p14 = scmp.ge.s32.totalorder %s13, 4
      %s23 = sphi 0, %s25
      %s26 = sphi 0, %s23
      %s27 = sphi 0, %s26
      %s43 = sphi 0, %s27
      %s49 = sphi 0, %s51
      %s52 = sphi 0, %s49
      %s53 = sphi 0, %s52
      %s69 = sphi 0, %s53
    $region4: #{tpu_custom_call.1} parent=1 // loop_header_branch
      %16 = sbr.rel (%p14) target = $region8
    $region5: #{tpu_custom_call.1} parent=1 // loop_body
      %s18 = ssub.s32 %s13, 1
      %s19 = ssub.s32 %s13, 2
      %s20 = sadd.s32 %s13, 1
      %s21 = ssub.s32 %s13, %s20
      %p22 = scmp.eq.s32.totalorder %s21, 0
      %s24 = sadd.s32 %s23, 1
      %s25 = scalar_select %p22, %s23, %s24
      %p28 = pneg %p22
      %p29 = scmp.eq.s32.totalorder %s13, 1
      %p30 = por %p28, %p29
      %p31 = scmp.ne.s32.totalorder %s23, %s26
      %p32 = scmp.eq.s32.totalorder %s13, 0
      %p33 = por %p31, %p32
      %p34 = scmp.ne.s32.totalorder %s23, %s26
      %p35 = scmp.eq.s32.totalorder %s18, 1
      %p36 = por %p34, %p35
      %p37 = scmp.ne.s32.totalorder %s26, %s27
      %p38 = scmp.eq.s32.totalorder %s18, 0
      %p39 = por %p37, %p38
      %p40 = scmp.ne.s32.totalorder %s26, %s27
      %p41 = scmp.eq.s32.totalorder %s19, 1
      %p42 = por %p40, %p41
      %p44 = scmp.ne.s32.totalorder %s27, %s43
      %p45 = scmp.eq.s32.totalorder %s19, 0
      %p46 = por %p44, %p45
      %s47 = ssub.s32 %s13, %s20
      %p48 = scmp.eq.s32.totalorder %s47, 0
      %s50 = sadd.s32 %s49, 1
      %s51 = scalar_select %p48, %s49, %s50
      %p54 = pneg %p48
      %p55 = scmp.eq.s32.totalorder %s13, 1
      %p56 = por %p54, %p55
      %p57 = scmp.ne.s32.totalorder %s49, %s52
      %p58 = scmp.eq.s32.totalorder %s13, 0
      %p59 = por %p57, %p58
      %p60 = scmp.ne.s32.totalorder %s49, %s52
      %p61 = scmp.eq.s32.totalorder %s18, 1
      %p62 = por %p60, %p61
      %p63 = scmp.ne.s32.totalorder %s52, %s53
      %p64 = scmp.eq.s32.totalorder %s18, 0
      %p65 = por %p63, %p64
      %p66 = scmp.ne.s32.totalorder %s52, %s53
      %p67 = scmp.eq.s32.totalorder %s19, 1
      %p68 = por %p66, %p67
      %p70 = scmp.ne.s32.totalorder %s53, %s69
      %p71 = scmp.eq.s32.totalorder %s19, 0
      %p72 = por %p70, %p71
      %p73 = scmp.le.s32.totalorder 1, %s13
      %p74 = scmp.lt.s32.totalorder %s13, 3
      %p75 = pnand %p73, %p74
      %p76 = pneg %p75
      // Predicated region
      $region9: #{tpu_custom_call.1} parent=5 // pred_check
        _
      $region10: #{tpu_custom_call.1} parent=5 // pred_check_branch
        %78 = sbr.rel (%p75) target = $region12
      $region11: #{tpu_custom_call.1} parent=5 // pred_region
        %s79 = ssub.s32 %s13, 1
      $region12: #{tpu_custom_call.1} parent=5 // pred_fallthru
        _
      %p80 = scmp.lt.s32.totalorder %s13, 2
      // Predicated region
      $region13: #{tpu_custom_call.1} parent=5 // pred_check
        %p81 = pneg %p80
      $region14: #{tpu_custom_call.1} parent=5 // pred_check_branch
        %83 = sbr.rel (%p81) target = $region16
      $region15: #{tpu_custom_call.1} parent=5 // pred_region
        // Predicated region
        $region17: #{tpu_custom_call.1} parent=15 // pred_check
          %p84 = pneg %p33
        $region18: #{tpu_custom_call.1} parent=15 // pred_check_branch
          %86 = sbr.rel (%p84) target = $region20
        $region19: #{tpu_custom_call.1} parent=15 // pred_region
          %s87 = sand.u32 %s23, 1
          %s88 = scalar_lea.sflag [#allocation3], %s87
          %s89 = sand.u32 %s23, 1
          %s90 = smul.addr %s89, 8
          %s91 = scalar_lea.vmem [#allocation2], %s90
          %93 = vsyncadd %s88, 0
          %s94 = smul.addr %s13, 8
          %s95 = scalar_lea.hbm %s0, %s94
          %s97 = sshll.u32 %s95, 4
          %s98 = int_to_ptr.hbm [resolvable:$true] %s97
          %s99 = sshll.u32 %s91, 4
          %s100 = int_to_ptr.vmem [resolvable:$true] %s99
          %102 = dma.hbm_to_vmem [thread:$0]  %s98, 128, %s100, %s88
        $region20: #{tpu_custom_call.1} parent=15 // pred_fallthru
          _
      $region16: #{tpu_custom_call.1} parent=5 // pred_fallthru
        _
      %p103 = scmp.le.s32.totalorder 1, %s13
      %p104 = scmp.lt.s32.totalorder %s13, 3
      %p105 = pnand %p103, %p104
      %p106 = pneg %p105
      // Predicated region
      $region21: #{tpu_custom_call.1} parent=5 // pred_check
        _
      $region22: #{tpu_custom_call.1} parent=5 // pred_check_branch
        %108 = sbr.rel (%p105) target = $region24
      $region23: #{tpu_custom_call.1} parent=5 // pred_region
        %s109 = ssub.s32 %s13, 1
        %s110 = sand.u32 %s26, 1
        %s111 = scalar_lea.sflag [#allocation3], %s110
        %s112 = sand.u32 %s26, 1
        %s113 = smul.addr %s112, 8
        %s114 = scalar_lea.vmem [#allocation2], %s113
        // Predicated region
        $region25: #{tpu_custom_call.1} parent=23 // pred_check
          %p115 = pneg %p39
        $region26: #{tpu_custom_call.1} parent=23 // pred_check_branch
          %117 = sbr.rel (%p115) target = $region28
        $region27: #{tpu_custom_call.1} parent=23 // pred_region
          %119 = dma.done %s111, 128
        $region28: #{tpu_custom_call.1} parent=23 // pred_fallthru
          _
        %s120 = sand.u32 %s26, 1
        %s121 = scalar_lea.sflag [#allocation3], %s120
        %s122 = sand.u32 %s26, 1
        %s123 = smul.addr %s122, 8
        %s124 = scalar_lea.vmem [#allocation2], %s123
        %p125 = pneg %p39
        %p126 = pneg %p36
        %p127 = pneg %p65
        %p128 = pneg %p62
        %s129 = sand.u32 %s52, 1
        %s130 = scalar_lea.sflag [#allocation4], %s129
        %s131 = sand.u32 %s52, 1
        %s132 = smul.addr %s131, 8
        %s133 = scalar_lea.vmem [#allocation5], %s132
        %v134 = vld [vmem:[%s114] sm:$0xff]
        %v135 = vmul.f32 %v134, 0.5
        %v136 = vmul.f32 %v134, 0.70710677
        %v137 = vmul.f32 %v136, %v136
        %v138 = vmin.f32 16.0, %v137
        %v139 = vmul.f32 %v138, 2.1237322e-06
        %v140 = vadd.f32 %v139, 0.00028619796
        %v141 = vmul.f32 %v138, %v140
        %v142 = vadd.f32 %v141, 0.0036580483
        %v143 = vmul.f32 %v138, %v142
        %v144 = vadd.f32 %v143, 0.05243302
        %v145 = vmul.f32 %v138, %v144
        %v146 = vadd.f32 %v145, 0.18741608
        %v147 = vmul.f32 %v138, %v146
        %v148 = vadd.f32 %v147, 1.1283791
        %v149 = vmul.f32 %v136, %v148
        %v150 = vmul.f32 %v138, 3.8918573e-05
        %v151 = vadd.f32 %v150, 0.001143296
        %v152 = vmul.f32 %v138, %v151
        %v153 = vadd.f32 %v152, 0.014752088
        %v154 = vmul.f32 %v138, %v153
        %v155 = vadd.f32 %v154, 0.112945676
        %v156 = vmul.f32 %v138, %v155
        %v157 = vadd.f32 %v156, 0.4994258
        %v158 = vmul.f32 %v138, %v157
        %v159 = vadd.f32 %v158, 1.0
        %v160 = vrcp.pop %v159
        %v161 = vmul.f32 %v159, %v160
        %v162 = vsub.f32 1.0, %v161
        %v163 = vmul.f32 %v160, %v162
        %v164 = vadd.f32 %v160, %v163
        %vm165 = vweird.f32 %v159
        %vm166 = vweird.f32 %v160
        %vm167 = vmor %vm165, %vm166
        %v168 = vsel %vm167, %v160, %v164
        %v169 = vand.u32 2147483647, %v159
        %vm170 = vcmp.eq.f32.partialorder %v169, 8.507059e+37
        %v171 = vand.u32 %v159, 2147483648
        %v172 = vor.u32 1.1754944e-38, %v171
        %v173 = vsel %vm170, %v172, %v168
        %v174 = vmul.f32 %v149, %v173
        %v175 = vmin.f32 %v174, 1.0
        %v176 = vmax.f32 %v175, -1.0
        %v177 = vadd.f32 %v176, 1.0
        %v178 = vmul.f32 %v135, %v177
        %180 = vrot.lane.b32.xlu0 %v134, 32
        %v181 = vpop.permute.xlu0 %180
        %v183 = vmul.f32 %v178, %v181
        %185 = vrot.lane.b32.xlu0 %v183, 96
        %v186 = vpop.permute.xlu0 %185
        %vm188 = vcmask 261120
        %189 = vst.msk [vmem:[%s133] sm:$0xff] %vm188, %v186
        %s190 = sand.u32 %s52, 1
        %s191 = scalar_lea.sflag [#allocation4], %s190
        %s192 = sand.u32 %s52, 1
        %s193 = smul.addr %s192, 8
        %s194 = scalar_lea.vmem [#allocation5], %s193
        // Predicated region
        $region29: #{tpu_custom_call.1} parent=23 // pred_check
          %p195 = pneg %p62
        $region30: #{tpu_custom_call.1} parent=23 // pred_check_branch
          %197 = sbr.rel (%p195) target = $region32
        $region31: #{tpu_custom_call.1} parent=23 // pred_region
          %199 = vsyncadd %s191, 0
          %s200 = smul.addr %s18, 8
          %s201 = scalar_lea.hbm %s1, %s200
          %s203 = sshll.u32 %s194, 4
          %s204 = int_to_ptr.vmem [resolvable:$true] %s203
          %s205 = sshll.u32 %s201, 4
          %s206 = int_to_ptr.hbm [resolvable:$true] %s205
          %208 = dma.vmem_to_hbm [thread:$0]  %s204, 128, %s206, %s191
        $region32: #{tpu_custom_call.1} parent=23 // pred_fallthru
          _
      $region24: #{tpu_custom_call.1} parent=5 // pred_fallthru
        _
      %p209 = scmp.le.s32.totalorder 2, %s13
      // Predicated region
      $region33: #{tpu_custom_call.1} parent=5 // pred_check
        %p210 = pneg %p209
      $region34: #{tpu_custom_call.1} parent=5 // pred_check_branch
        %212 = sbr.rel (%p210) target = $region36
      $region35: #{tpu_custom_call.1} parent=5 // pred_region
        %s213 = ssub.s32 %s13, 2
        // Predicated region
        $region37: #{tpu_custom_call.1} parent=35 // pred_check
          %p214 = pneg %p68
        $region38: #{tpu_custom_call.1} parent=35 // pred_check_branch
          %216 = sbr.rel (%p214) target = $region40
        $region39: #{tpu_custom_call.1} parent=35 // pred_region
          %s217 = sand.u32 %s53, 1
          %s218 = scalar_lea.sflag [#allocation4], %s217
          %s219 = sand.u32 %s53, 1
          %s220 = smul.addr %s219, 8
          %s221 = scalar_lea.vmem [#allocation5], %s220
          %223 = dma.done %s218, 128
        $region40: #{tpu_custom_call.1} parent=35 // pred_fallthru
          _
      $region36: #{tpu_custom_call.1} parent=5 // pred_fallthru
        _
    $region6: #{tpu_custom_call.1} parent=1 // loop_footer
      %s17 = sadd.s32 1, %s13
    $region7: #{tpu_custom_call.1} parent=1 // loop_footer_branch
      %12 = sbr.rel target = $region3
    $region8: #{tpu_custom_call.1} parent=1 // loop_exit
      _
    %224 = vsyncpa [#allocation3], 1
    %s225 = scalar_lea.sflag [#allocation3], 1
    %226 = vsyncpa %s225, 1
    %227 = vsyncpa [#allocation4], 1
    %s228 = scalar_lea.sflag [#allocation4], 1
    %229 = vsyncpa %s228, 1

</llo_original>
